<compile_context>
chip_gen: v5e
topology: v5e:2x2
jax: 0.10.0
libtpu: 0.0.40
codegen_flags: <defaults>
</compile_context>

<pallas_src>
import math

import jax
import jax.numpy as jnp
from jax.experimental import pallas as pl
from jax.experimental.pallas import tpu as pltpu


# ---- packed scalar parameter layout (flat f32 SMEM vector, 14 per stimulus) --
_P_CX, _P_CY = 0, 1                                   # center offsets (pixel coords)
_P_A1, _P_B1, _P_C1 = 2, 3, 4                         # envelope quadratic form, gabor 1
_P_A2, _P_B2, _P_C2 = 5, 6, 7                         # envelope quadratic form, gabor 2
_P_KCT1, _P_KST1, _P_KCT2, _P_KST2 = 8, 9, 10, 11     # (2*pi/Lambda)*cos/sin(theta_i)
_P_PSI, _P_BETA = 12, 13
_NUM_PARAMS = 14


def _plaids_gabor_kernel(params_ref, out_ref):
    n = pl.program_id(0)
    _, tm, tn = out_ref.shape
    row0 = pl.program_id(1) * tm
    col0 = pl.program_id(2) * tn

    base = n * _NUM_PARAMS

    def p(i):
        return params_ref[base + i]

    # Rank-1 centered coordinate vectors (no full (H, W) grids materialized).
    r = jax.lax.broadcasted_iota(jnp.int32, (tm, 1), 0) + row0
    c = jax.lax.broadcasted_iota(jnp.int32, (1, tn), 1) + col0
    y = r.astype(jnp.float32) - p(_P_CY)          # (tm, 1)
    x = c.astype(jnp.float32) - p(_P_CX)          # (1, tn)

    x2 = x * x                                    # (1, tn)   rank-1
    y2 = y * y                                    # (tm, 1)   rank-1
    xy = x * y                                    # (tm, tn)  only shared full-tile product

    psi = p(_P_PSI)
    beta = p(_P_BETA)

    def gabor(A, B, C, kct, kst):
        # Envelope: -0.5*(x_th^2/sx^2 + y_th^2/sy^2) == A*x^2 + B*y^2 + C*x*y
        env = jnp.exp((A * x2 + B * y2) + C * xy)               # one EUP push
        # Carrier: phase = k*x_th + psi = px + py with rank-1 px, py;
        # cos(px + py) = cos(px)*cos(py) - sin(px)*sin(py)  (rank-1 trig only).
        px = x * kct + psi                                      # (1, tn)
        py = y * kst                                            # (tm, 1)
        carrier = jnp.cos(px) * jnp.cos(py) - jnp.sin(px) * jnp.sin(py)
        return env * carrier

    g1 = gabor(p(_P_A1), p(_P_B1), p(_P_C1), p(_P_KCT1), p(_P_KST1))
    g2 = gabor(p(_P_A2), p(_P_B2), p(_P_C2), p(_P_KCT2), p(_P_KST2))
    out_ref[0, :, :] = g1 + beta * g2


def _round_up(a, b):
    return -(-a // b) * b


def _pack_params(canvas_size, theta, sigma, Lambda, psi, gamma, angle, beta, center):
    """Pack per-stimulus parameters into a flat (N * 14,) f32 vector."""
    H, W = canvas_size
    center = jnp.asarray(center, jnp.float32)
    if center.ndim == 1:
        center = center[None, :]
    cx = center[:, 0]
    cy = center[:, 1]

    vals = [jnp.asarray(v, jnp.float32).reshape(-1)
            for v in (theta, sigma, Lambda, psi, gamma, angle, beta, cx, cy)]
    theta, sigma, Lambda, psi, gamma, angle, beta, cx, cy = jnp.broadcast_arrays(*vals)

    theta2 = theta + angle
    ct1, st1 = jnp.cos(theta), jnp.sin(theta)
    ct2, st2 = jnp.cos(theta2), jnp.sin(theta2)

    a = -0.5 / (sigma * sigma)            # -0.5 / sigma_x^2
    b = a * (gamma * gamma)               # -0.5 / sigma_y^2  (sigma_y = sigma / gamma)
    k = (2.0 * math.pi) / Lambda

    def quad(ct, st):
        A = a * ct * ct + b * st * st
        B = a * st * st + b * ct * ct
        C = 2.0 * (a - b) * ct * st
        return A, B, C

    A1, B1, C1 = quad(ct1, st1)
    A2, B2, C2 = quad(ct2, st2)

    cx_off = (W - 1) / 2.0 + cx
    cy_off = (H - 1) / 2.0 + cy

    packed = jnp.stack(
        [cx_off, cy_off,
         A1, B1, C1, A2, B2, C2,
         k * ct1, k * st1, k * ct2, k * st2,
         psi, beta], axis=-1).astype(jnp.float32)       # (N, 14)
    assert packed.shape[-1] == _NUM_PARAMS
    return packed.reshape(-1)                           # flat -> compact SMEM layout


def _choose_tiles(H, W, tile_m, tile_n, n_batch):
    # Lane (last) dim: full width if < 128, else a multiple of 128 not exceeding W.
    if W < 128:
        tn = W
    else:
        tn = min(_round_up(tile_n, 128), (W // 128) * 128)
    # Sublane dim: full height if < 8, else a multiple of 8 not exceeding H.
    if H < 8:
        tm = H
    else:
        tm = min(_round_up(tile_m, 8), (H // 8) * 8)
    # v7x has 2 TensorCores: make sure the grid has >= 2 blocks when possible.
    if n_batch * pl.cdiv(H, tm) * pl.cdiv(W, tn) < 2 and H >= 16:
        tm = _round_up(pl.cdiv(H, 2), 8)
    return tm, tn


def plaids_gabor_batch(canvas_size, theta, sigma, Lambda, psi, gamma, angle, beta,
                       center, *, tile_m=256, tile_n=512):
    """Batched PlaidsGabor.forward(): returns f32[N, H, W] (N from broadcasting)."""
    H, W = canvas_size
    params = _pack_params(canvas_size, theta, sigma, Lambda, psi, gamma, angle,
                          beta, center)
    n_batch = params.shape[0] // _NUM_PARAMS

    tm, tn = _choose_tiles(H, W, tile_m, tile_n, n_batch)
    grid = (n_batch, pl.cdiv(H, tm), pl.cdiv(W, tn))

    return pl.pallas_call(
        _plaids_gabor_kernel,
        out_shape=jax.ShapeDtypeStruct((n_batch, H, W), jnp.float32),
        grid_spec=pltpu.PrefetchScalarGridSpec(
            num_scalar_prefetch=1,
            grid=grid,
            in_specs=[],
            out_specs=pl.BlockSpec((1, tm, tn), lambda n, i, j, params_ref: (n, i, j)),
        ),
        compiler_params=pltpu.CompilerParams(
            dimension_semantics=("parallel", "parallel", "parallel")),
        cost_estimate=pl.CostEstimate(
            flops=18 * n_batch * H * W,
            transcendentals=2 * n_batch * H * W,
            bytes_accessed=4 * n_batch * H * W),
    )(params)


def plaids_gabor(canvas_size, theta, sigma, Lambda, psi, gamma, angle, beta, center,
                 **tile_kwargs):
    """Single-stimulus PlaidsGabor.forward(). Returns f32[H, W]."""
    out = plaids_gabor_batch(canvas_size, theta, sigma, Lambda, psi, gamma, angle,
                             beta, center, **tile_kwargs)
    return out[0]


def plaids_gabor_ref(canvas_size, theta, sigma, Lambda, psi, gamma, angle, beta, center):
    """Pure-JAX reference (mirrors the PyTorch math) for correctness checking."""
    H, W = canvas_size
    ys = jnp.arange(-(H - 1) / 2.0, (H - 1) / 2.0 + 1.0, dtype=jnp.float32)
    xs = jnp.arange(-(W - 1) / 2.0, (W - 1) / 2.0 + 1.0, dtype=jnp.float32)
    y, x = jnp.meshgrid(ys, xs, indexing="ij")
    y = y - center[1]
    x = x - center[0]
    sx, sy = sigma, sigma / gamma

    def gabor(th):
        x_t = x * jnp.cos(th) + y * jnp.sin(th)
        y_t = -x * jnp.sin(th) + y * jnp.cos(th)
        return jnp.exp(-0.5 * (x_t ** 2 / sx ** 2 + y_t ** 2 / sy ** 2)) * \
            jnp.cos(2.0 * jnp.pi / Lambda * x_t + psi)

    return gabor(theta) + beta * gabor(theta + angle)


if __name__ == "__main__":
    # Deterministic parameter setup (synthetic, no checkpoint).
    key = jax.random.PRNGKey(0)
    jitter = jax.random.uniform(key, (9,), minval=-0.05, maxval=0.05)

    theta = 0.5 + float(jitter[0])
    sigma = 3.0 + float(jitter[1])
    Lambda = 8.0 + float(jitter[2])
    psi = 0.3 + float(jitter[3])
    gamma = 0.8 + float(jitter[4])
    angle = 1.047 + float(jitter[5])
    beta = 0.7 + float(jitter[6])
    center = (1.0 + float(jitter[7]), -2.0 + float(jitter[8]))

    # Single-stimulus cases (module forward: one (H, W) image).
    #   (16, 16): small canvas -> row split so v7x gets 2 grid blocks
    #   (40, 200): non-128-aligned width -> masked edge lane block, no padding/slice
    #   (93, 93): both dims non-aligned -> masked edge sublane block
    for cs in [(16, 16), (40, 200), (93, 93)]:
        out = jax.block_until_ready(
            plaids_gabor(cs, theta, sigma, Lambda, psi, gamma, angle, beta, center))
        ref = plaids_gabor_ref(cs, theta, sigma, Lambda, psi, gamma, angle, beta, center)
        assert out.shape == tuple(cs) and out.dtype == jnp.float32
        err = float(jnp.max(jnp.abs(out - ref)))
        assert jnp.allclose(out, ref, atol=1e-4, rtol=1e-4), \
            f"mismatch vs reference for {cs}: max abs err {err}"

    # Batched stimulus sweep (many plaids per pallas_call).
    n = 4
    thetas = [theta + 0.3 * i for i in range(n)]
    betas = [beta + 0.05 * i for i in range(n)]
    cs = (24, 24)
    out_b = jax.block_until_ready(
        plaids_gabor_batch(cs, thetas, sigma, Lambda, psi, gamma, angle, betas, center))
    ref_b = jnp.stack([
        plaids_gabor_ref(cs, thetas[i], sigma, Lambda, psi, gamma, angle, betas[i], center)
        for i in range(n)])
    assert out_b.shape == (n,) + cs and out_b.dtype == jnp.float32
    assert jnp.allclose(out_b, ref_b, atol=1e-4, rtol=1e-4), "batched mismatch vs reference"

    print("KERNEL_OK")
</pallas_src>

<mosaic_0001>
module attributes {stable_mosaic.version = 11 : i64} {
  func.func @_plaids_gabor_kernel(%arg0: i32, %arg1: i32, %arg2: i32, %arg3: memref<14xf32, #tpu.memory_space<smem>>, %arg4: memref<1x8x16xf32, #tpu.memory_space<vmem>>) attributes {dimension_semantics = [#tpu.dimension_semantics<parallel>, #tpu.dimension_semantics<parallel>, #tpu.dimension_semantics<parallel>], iteration_bounds = array<i64: 1, 2, 1>, scalar_prefetch = 1 : i64, scratch_operands = 0 : i64, tpu.core_type = #tpu.core_type<tc>, window_params = [{transform_indices = @transform_0, window_bounds = array<i64: 1, 8, 16>}]} {
    %c8_i32 = arith.constant 8 : i32
    %0 = arith.muli %arg1, %c8_i32 : i32
    %c16_i32 = arith.constant 16 : i32
    %1 = arith.muli %arg2, %c16_i32 : i32
    %c14_i32 = arith.constant 14 : i32
    %2 = arith.muli %arg0, %c14_i32 : i32
    %3 = tpu.iota {dimensions = array<i32: 0>} : vector<8x1xi32>
    %4 = vector.broadcast %0 : i32 to vector<8x1xi32>
    %5 = arith.addi %3, %4 : vector<8x1xi32>
    %6 = tpu.iota {dimensions = array<i32: 1>} : vector<1x16xi32>
    %7 = vector.broadcast %1 : i32 to vector<1x16xi32>
    %8 = arith.addi %6, %7 : vector<1x16xi32>
    %9 = arith.sitofp %5 : vector<8x1xi32> to vector<8x1xf32>
    %c1_i32 = arith.constant 1 : i32
    %10 = arith.addi %2, %c1_i32 : i32
    %11 = arith.index_cast %10 : i32 to index
    %12 = memref.load %arg3[%11] : memref<14xf32, #tpu.memory_space<smem>>
    %13 = vector.broadcast %12 : f32 to vector<8x1xf32>
    %14 = arith.subf %9, %13 : vector<8x1xf32>
    %15 = arith.sitofp %8 : vector<1x16xi32> to vector<1x16xf32>
    %c0_i32 = arith.constant 0 : i32
    %16 = arith.addi %2, %c0_i32 : i32
    %17 = arith.index_cast %16 : i32 to index
    %18 = memref.load %arg3[%17] : memref<14xf32, #tpu.memory_space<smem>>
    %19 = vector.broadcast %18 : f32 to vector<1x16xf32>
    %20 = arith.subf %15, %19 : vector<1x16xf32>
    %21 = arith.mulf %20, %20 : vector<1x16xf32>
    %22 = arith.mulf %14, %14 : vector<8x1xf32>
    %23 = vector.broadcast %20 : vector<1x16xf32> to vector<8x16xf32>
    %24 = vector.broadcast %14 : vector<8x1xf32> to vector<8x16xf32>
    %25 = arith.mulf %23, %24 : vector<8x16xf32>
    %c12_i32 = arith.constant 12 : i32
    %26 = arith.addi %2, %c12_i32 : i32
    %27 = arith.index_cast %26 : i32 to index
    %28 = memref.load %arg3[%27] : memref<14xf32, #tpu.memory_space<smem>>
    %c13_i32 = arith.constant 13 : i32
    %29 = arith.addi %2, %c13_i32 : i32
    %30 = arith.index_cast %29 : i32 to index
    %31 = memref.load %arg3[%30] : memref<14xf32, #tpu.memory_space<smem>>
    %c2_i32 = arith.constant 2 : i32
    %32 = arith.addi %2, %c2_i32 : i32
    %33 = arith.index_cast %32 : i32 to index
    %34 = memref.load %arg3[%33] : memref<14xf32, #tpu.memory_space<smem>>
    %c3_i32 = arith.constant 3 : i32
    %35 = arith.addi %2, %c3_i32 : i32
    %36 = arith.index_cast %35 : i32 to index
    %37 = memref.load %arg3[%36] : memref<14xf32, #tpu.memory_space<smem>>
    %c4_i32 = arith.constant 4 : i32
    %38 = arith.addi %2, %c4_i32 : i32
    %39 = arith.index_cast %38 : i32 to index
    %40 = memref.load %arg3[%39] : memref<14xf32, #tpu.memory_space<smem>>
    %c8_i32_0 = arith.constant 8 : i32
    %41 = arith.addi %2, %c8_i32_0 : i32
    %42 = arith.index_cast %41 : i32 to index
    %43 = memref.load %arg3[%42] : memref<14xf32, #tpu.memory_space<smem>>
    %c9_i32 = arith.constant 9 : i32
    %44 = arith.addi %2, %c9_i32 : i32
    %45 = arith.index_cast %44 : i32 to index
    %46 = memref.load %arg3[%45] : memref<14xf32, #tpu.memory_space<smem>>
    %47 = vector.broadcast %34 : f32 to vector<1x16xf32>
    %48 = arith.mulf %47, %21 : vector<1x16xf32>
    %49 = vector.broadcast %37 : f32 to vector<8x1xf32>
    %50 = arith.mulf %49, %22 : vector<8x1xf32>
    %51 = vector.broadcast %48 : vector<1x16xf32> to vector<8x16xf32>
    %52 = vector.broadcast %50 : vector<8x1xf32> to vector<8x16xf32>
    %53 = arith.addf %51, %52 : vector<8x16xf32>
    %54 = vector.broadcast %40 : f32 to vector<8x16xf32>
    %55 = arith.mulf %54, %25 : vector<8x16xf32>
    %56 = arith.addf %53, %55 : vector<8x16xf32>
    %57 = math.exp %56 : vector<8x16xf32>
    %58 = vector.broadcast %43 : f32 to vector<1x16xf32>
    %59 = arith.mulf %20, %58 : vector<1x16xf32>
    %60 = vector.broadcast %28 : f32 to vector<1x16xf32>
    %61 = arith.addf %59, %60 : vector<1x16xf32>
    %62 = vector.broadcast %46 : f32 to vector<8x1xf32>
    %63 = arith.mulf %14, %62 : vector<8x1xf32>
    %64 = math.cos %61 : vector<1x16xf32>
    %65 = math.cos %63 : vector<8x1xf32>
    %66 = vector.broadcast %64 : vector<1x16xf32> to vector<8x16xf32>
    %67 = vector.broadcast %65 : vector<8x1xf32> to vector<8x16xf32>
    %68 = arith.mulf %66, %67 : vector<8x16xf32>
    %69 = math.sin %61 : vector<1x16xf32>
    %70 = math.sin %63 : vector<8x1xf32>
    %71 = vector.broadcast %69 : vector<1x16xf32> to vector<8x16xf32>
    %72 = vector.broadcast %70 : vector<8x1xf32> to vector<8x16xf32>
    %73 = arith.mulf %71, %72 : vector<8x16xf32>
    %74 = arith.subf %68, %73 : vector<8x16xf32>
    %75 = arith.mulf %57, %74 : vector<8x16xf32>
    %c5_i32 = arith.constant 5 : i32
    %76 = arith.addi %2, %c5_i32 : i32
    %77 = arith.index_cast %76 : i32 to index
    %78 = memref.load %arg3[%77] : memref<14xf32, #tpu.memory_space<smem>>
    %c6_i32 = arith.constant 6 : i32
    %79 = arith.addi %2, %c6_i32 : i32
    %80 = arith.index_cast %79 : i32 to index
    %81 = memref.load %arg3[%80] : memref<14xf32, #tpu.memory_space<smem>>
    %c7_i32 = arith.constant 7 : i32
    %82 = arith.addi %2, %c7_i32 : i32
    %83 = arith.index_cast %82 : i32 to index
    %84 = memref.load %arg3[%83] : memref<14xf32, #tpu.memory_space<smem>>
    %c10_i32 = arith.constant 10 : i32
    %85 = arith.addi %2, %c10_i32 : i32
    %86 = arith.index_cast %85 : i32 to index
    %87 = memref.load %arg3[%86] : memref<14xf32, #tpu.memory_space<smem>>
    %c11_i32 = arith.constant 11 : i32
    %88 = arith.addi %2, %c11_i32 : i32
    %89 = arith.index_cast %88 : i32 to index
    %90 = memref.load %arg3[%89] : memref<14xf32, #tpu.memory_space<smem>>
    %91 = vector.broadcast %78 : f32 to vector<1x16xf32>
    %92 = arith.mulf %91, %21 : vector<1x16xf32>
    %93 = vector.broadcast %81 : f32 to vector<8x1xf32>
    %94 = arith.mulf %93, %22 : vector<8x1xf32>
    %95 = vector.broadcast %92 : vector<1x16xf32> to vector<8x16xf32>
    %96 = vector.broadcast %94 : vector<8x1xf32> to vector<8x16xf32>
    %97 = arith.addf %95, %96 : vector<8x16xf32>
    %98 = vector.broadcast %84 : f32 to vector<8x16xf32>
    %99 = arith.mulf %98, %25 : vector<8x16xf32>
    %100 = arith.addf %97, %99 : vector<8x16xf32>
    %101 = math.exp %100 : vector<8x16xf32>
    %102 = vector.broadcast %87 : f32 to vector<1x16xf32>
    %103 = arith.mulf %20, %102 : vector<1x16xf32>
    %104 = vector.broadcast %28 : f32 to vector<1x16xf32>
    %105 = arith.addf %103, %104 : vector<1x16xf32>
    %106 = vector.broadcast %90 : f32 to vector<8x1xf32>
    %107 = arith.mulf %14, %106 : vector<8x1xf32>
    %108 = math.cos %105 : vector<1x16xf32>
    %109 = math.cos %107 : vector<8x1xf32>
    %110 = vector.broadcast %108 : vector<1x16xf32> to vector<8x16xf32>
    %111 = vector.broadcast %109 : vector<8x1xf32> to vector<8x16xf32>
    %112 = arith.mulf %110, %111 : vector<8x16xf32>
    %113 = math.sin %105 : vector<1x16xf32>
    %114 = math.sin %107 : vector<8x1xf32>
    %115 = vector.broadcast %113 : vector<1x16xf32> to vector<8x16xf32>
    %116 = vector.broadcast %114 : vector<8x1xf32> to vector<8x16xf32>
    %117 = arith.mulf %115, %116 : vector<8x16xf32>
    %118 = arith.subf %112, %117 : vector<8x16xf32>
    %119 = arith.mulf %101, %118 : vector<8x16xf32>
    %120 = vector.broadcast %31 : f32 to vector<8x16xf32>
    %121 = arith.mulf %120, %119 : vector<8x16xf32>
    %122 = arith.addf %75, %121 : vector<8x16xf32>
    %c0 = arith.constant 0 : index
    %c0_1 = arith.constant 0 : index
    %c0_2 = arith.constant 0 : index
    %123 = vector.load %arg4[%c0, %c0_1, %c0_2] : memref<1x8x16xf32, #tpu.memory_space<vmem>>, vector<1x8x16xf32>
    %124 = vector.shape_cast %123 : vector<1x8x16xf32> to vector<8x16xf32>
    %125 = vector.shape_cast %122 : vector<8x16xf32> to vector<1x8x16xf32>
    tpu.vector_store %arg4[%c0, %c0_1, %c0_2], %125 {strides = array<i32>} : memref<1x8x16xf32, #tpu.memory_space<vmem>>, vector<1x8x16xf32>,
    return
  }
  func.func @transform_0(%arg0: i32, %arg1: i32, %arg2: i32, %arg3: memref<14xf32, #tpu.memory_space<smem>>) -> (i32, i32, i32) {
    %c0_i32 = arith.constant 0 : i32
    return %arg0, %arg1, %arg2 : i32, i32, i32
  }
}

</mosaic_0001>

<llo_original>
// kernel: tpu_custom_call.1
$region0: #{tpu_custom_call.1}
  #allocation0 [shape = 'u32[]', space=smem, size = 0x4, offset = 0x4, fixed_abs, tag = 'smem constant byte address 0x4 - core index']
  #allocation1 [shape = 'u32[72,128]{1,0:T(1,128)}', space=vmem, size = 0x9000, scoped, tag = 'internal scratch']
  #allocation2 [shape = 's32[1]{0}', space=sflag, size = 0x4, scoped, tag = 'scoped memory for tpu_custom_call.1']
  #allocation3 [shape = 'u8[512]{0}', space=smem, size = 0x200, scoped, tag = 'prefetched SMEM operand 0']
  %s0 = inlined_call_operand.hbm [shape: f32[14], index: 0, kind: input, shape index: {}]
  %s1 = inlined_call_operand.hbm [shape: f32[1,16,16], index: 1, kind: output, shape index: {}]
  %s2 = sld [smem:[#allocation0]]
  $region25: #{tpu_custom_call.1} parent=0
    _
  %s4 = ssub.s32 1, %s2
  %s5 = scalar_select 0, %s4, %s2
  %s7 = sshll.u32 %s0, 4
  %s8 = int_to_ptr.hbm [resolvable:$true] %s7
  %10 = dma.hbm_to_smem %s8, 16, [#allocation3], [#allocation2]
  %12 = dma.done [#allocation2], 16
  %13 = sfence
  $region1: #{tpu_custom_call.1} parent=0
    #allocation4 [shape = 'u8[8192]{0}', space=vmem, size = 0x2000, scoped, tag = 'output window, operand 0']
    #allocation5 [shape = 's32[2]{0}', space=sflag, size = 0x8, scoped, tag = 'scoped memory for tpu_custom_call.1']
    %14 = vsyncpa [#allocation5], 0
    %s15 = scalar_lea.sflag [#allocation5], 1
    %16 = vsyncpa %s15, 0
    loop: start=0, step=1, limit=3
    $region2: #{tpu_custom_call.1} parent=1 // loop_pre_header
      _
    $region3: #{tpu_custom_call.1} parent=1 // loop_header
      %s18 = sphi 0, %s22
      %p19 = scmp.ge.s32.totalorder %s18, 3
      %s24 = sphi 0, %s40
      %s25 = sphi 0, %s36
      %s26 = sphi 0, %s32
      %s27 = sphi 0, %s24
      %s28 = sphi 0, %s25
      %s29 = sphi 0, %s26
      %s47 = sphi 0, %s49
      %s50 = sphi 0, %s47
      %s60 = sphi 0, %s50
    $region4: #{tpu_custom_call.1} parent=1 // loop_header_branch
      %21 = sbr.rel (%p19) target = $region8
    $region5: #{tpu_custom_call.1} parent=1 // loop_body
      %s23 = ssub.s32 %s18, 1
      %s30 = sadd.s32 1, %s26
      %p31 = scmp.ge.s32.totalorder %s30, 1
      %s32 = scalar_select %p31, 0, %s30
      %s33 = sadd.s32 1, %s25
      %s34 = scalar_select %p31, %s33, %s25
      %p35 = scmp.ge.s32.totalorder %s34, 2
      %s36 = scalar_select %p35, 0, %s34
      %s37 = sadd.s32 1, %s24
      %s38 = scalar_select %p35, %s37, %s24
      %p39 = scmp.ge.s32.totalorder %s38, 1
      %s40 = scalar_select %p39, 0, %s38
      %s41 = ssub.s32 %s24, %s40
      %s42 = ssub.s32 %s25, %s36
      %s43 = sor.u32 %s41, %s42
      %s44 = ssub.s32 %s26, %s32
      %s45 = sor.u32 %s43, %s44
      %p46 = scmp.eq.s32.totalorder %s45, 0
      %s48 = sadd.s32 %s47, 1
      %s49 = scalar_select %p46, %s47, %s48
      %p51 = pneg %p46
      %p52 = scmp.eq.s32.totalorder %s18, 1
      %p53 = por %p51, %p52
      %p54 = scmp.ne.s32.totalorder %s47, %s50
      %p55 = scmp.eq.s32.totalorder %s18, 0
      %p56 = por %p54, %p55
      %p57 = scmp.ne.s32.totalorder %s47, %s50
      %p58 = scmp.eq.s32.totalorder %s23, 1
      %p59 = por %p57, %p58
      %p61 = scmp.ne.s32.totalorder %s50, %s60
      %p62 = scmp.eq.s32.totalorder %s23, 0
      %p63 = por %p61, %p62
      %p64 = scmp.lt.s32.totalorder %s18, 2
      // Predicated region
      $region9: #{tpu_custom_call.1} parent=5 // pred_check
        %p65 = pneg %p64
      $region10: #{tpu_custom_call.1} parent=5 // pred_check_branch
        %67 = sbr.rel (%p65) target = $region12
      $region11: #{tpu_custom_call.1} parent=5 // pred_region
        %p68 = pneg %p56
        %p69 = pneg %p53
        %s70 = sand.u32 %s47, 1
        %s71 = scalar_lea.sflag [#allocation5], %s70
        %s72 = sand.u32 %s47, 1
        %s73 = smul.addr %s72, 8
        %s74 = scalar_lea.vmem [#allocation4], %s73
        %s75 = smul.u32 %s25, 8
        %s76 = smul.u32 %s26, 16
        %s77 = smul.u32 %s24, 14
        %v78 = vlaneseq
        %v79 = vshrl.u32 %v78, 7
        %v80 = vstv %s75
        %v81 = vadd.s32 %v79, %v80
        %v82 = vlaneseq
        %v83 = vand.u32 %v82, 127
        %v84 = vstv %s76
        %v85 = vadd.s32 %v83, %v84
        %v86 = vcvt.s32.f32 %v81
        %s87 = sadd.s32 %s77, 1
        %s88 = sld [smem:[#allocation3 + %s87]]
        %v89 = vstv %s88
        %v90 = vsub.f32 %v86, %v89
        %v91 = vcvt.s32.f32 %v85
        %s92 = sld [smem:[#allocation3 + %s77]]
        %v93 = vstv %s92
        %v94 = vsub.f32 %v91, %v93
        %v95 = vmul.f32 %v94, %v94
        %v96 = vmul.f32 %v90, %v90
        %v97 = vmul.f32 %v94, %v90
        %s98 = sadd.s32 %s77, 12
        %s99 = sld [smem:[#allocation3 + %s98]]
        %s100 = sadd.s32 %s77, 13
        %s101 = sld [smem:[#allocation3 + %s100]]
        %s102 = sadd.s32 %s77, 2
        %s103 = sld [smem:[#allocation3 + %s102]]
        %s104 = sadd.s32 %s77, 3
        %s105 = sld [smem:[#allocation3 + %s104]]
        %s106 = sadd.s32 %s77, 4
        %s107 = sld [smem:[#allocation3 + %s106]]
        %s108 = sadd.s32 %s77, 8
        %s109 = sld [smem:[#allocation3 + %s108]]
        %s110 = sadd.s32 %s77, 9
        %s111 = sld [smem:[#allocation3 + %s110]]
        %v112 = vstv %s103
        %v113 = vmul.f32 %v112, %v95
        %v114 = vstv %s105
        %v115 = vmul.f32 %v114, %v96
        %v116 = vadd.f32 %v113, %v115
        %v117 = vstv %s107
        %v118 = vmul.f32 %v117, %v97
        %v119 = vadd.f32 %v116, %v118
        %v120 = vmul.f32 %v119, 1.442695
        %v121 = vpow.pop %v120
        %v122 = vstv %s109
        %v123 = vmul.f32 %v94, %v122
        %v124 = vstv %s99
        %v125 = vadd.f32 %v123, %v124
        %v126 = vstv %s111
        %v127 = vmul.f32 %v90, %v126
        %v128 = vand.u32 2147483647, %v125
        %vm129 = vcmp.le.f32.partialorder %v128, 0.7853982
        %vm130 = vcmp.lt.s32.totalorder %v125, 0
        %v131 = vand.u32 %v125, 2139095040
        %v132 = vshrl.u32 %v131, 23
        %v133 = vsub.s32 %v132, 127
        %v134 = vand.u32 2147483647, %v125
        %v135 = vand.u32 %v134, 8388607
        %v136 = vor.u32 %v135, 8388608
        %v137 = vsub.s32 0, %v136
        %v138 = vadd.s32 %v133, 1
        %vm139 = vcmp.gt.s32.totalorder %v138, 0
        %v140 = vsel %vm139, %v138, 0
        %v141 = vshrl.u32 %v140, 5
        %v142 = vand.u32 %v140, 31
        %v143 = vsub.s32 32, %v142
        %v144 = vshrl.u32 683565275, %v143
        %v145 = vshll.u32 683565275, %v142
        %v146 = vshrl.u32 2475754826, %v143
        %v147 = vor.u32 %v145, %v146
        %v148 = vshll.u32 2475754826, %v142
        %v149 = vshrl.u32 2131351028, %v143
        %v150 = vor.u32 %v148, %v149
        %v151 = vshll.u32 2131351028, %v142
        %v152 = vshrl.u32 2102212464, %v143
        %v153 = vor.u32 %v151, %v152
        %v154 = vshll.u32 2102212464, %v142
        %v155 = vshrl.u32 920167782, %v143
        %v156 = vor.u32 %v154, %v155
        %v157 = vshll.u32 920167782, %v142
        %v158 = vshrl.u32 1326507024, %v143
        %v159 = vor.u32 %v157, %v158
        %vm160 = vcmp.lt.s32.totalorder %v141, 1
        %vm161 = vcmp.lt.s32.totalorder %v141, 2
        %vm162 = vcmp.lt.s32.totalorder %v141, 3
        %vm163 = vcmp.lt.s32.totalorder %v141, 4
        %v164 = vsel %vm160, %v144, %v147
        %v165 = vsel %vm163, %v153, 2102212464
        %v166 = vsel %vm162, %v150, %v165
        %v167 = vsel %vm161, %v164, %v166
        %v168 = vsel %vm160, %v147, %v150
        %v169 = vsel %vm163, %v156, 920167782
        %v170 = vsel %vm162, %v153, %v169
        %v171 = vsel %vm161, %v168, %v170
        %v172 = vsel %vm160, %v150, %v153
        %v173 = vsel %vm163, %v159, 1326507024
        %v174 = vsel %vm162, %v156, %v173
        %v175 = vsel %vm161, %v172, %v174
        %v176 = vshll.u32 %v136, 8
        %v177 = vand.u32 %v176, 65535
        %v178 = vshrl.u32 %v176, 16
        %v179 = vand.u32 %v175, 65535
        %v180 = vshrl.u32 %v175, 16
        %v181 = vmul.u32 %v177, %v179
        %v182 = vmul.u32 %v177, %v180
        %v183 = vmul.u32 %v178, %v179
        %v184 = vmul.u32 %v178, %v180
        %v185 = vshll.u32 %v182, 16
        %v186 = vshrl.u32 %v182, 16
        %v187 = vshll.u32 %v183, 16
        %v188 = vshrl.u32 %v183, 16
        %vm189 = vc.u32 %v181, %v185
        %v190 = vsel %vm189, 1, 0
        %v191 = vadd.s32 %v181, %v185
        %v192 = vadd.s32 %v184, %v190
        %vm193 = vc.u32 %v191, %v187
        %v194 = vsel %vm193, 1, 0
        %v195 = vadd.s32 %v191, %v187
        %v196 = vadd.s32 %v192, %v194
        %v197 = vadd.s32 %v196, %v186
        %v198 = vadd.s32 %v197, %v188
        %v199 = vand.u32 %v176, 65535
        %v200 = vshrl.u32 %v176, 16
        %v201 = vand.u32 %v171, 65535
        %v202 = vshrl.u32 %v171, 16
        %v203 = vmul.u32 %v199, %v201
        %v204 = vmul.u32 %v199, %v202
        %v205 = vmul.u32 %v200, %v201
        %v206 = vmul.u32 %v200, %v202
        %v207 = vshll.u32 %v204, 16
        %v208 = vshrl.u32 %v204, 16
        %v209 = vshll.u32 %v205, 16
        %v210 = vshrl.u32 %v205, 16
        %vm211 = vc.u32 %v203, %v207
        %v212 = vsel %vm211, 1, 0
        %v213 = vadd.s32 %v203, %v207
        %v214 = vadd.s32 %v206, %v212
        %vm215 = vc.u32 %v213, %v209
        %v216 = vsel %vm215, 1, 0
        %v217 = vadd.s32 %v213, %v209
        %v218 = vadd.s32 %v214, %v216
        %v219 = vadd.s32 %v218, %v208
        %v220 = vadd.s32 %v219, %v210
        %v221 = vmul.u32 %v176, %v167
        %v222 = vadd.s32 %v198, %v217
        %vm223 = vc.u32 %v198, %v217
        %v224 = vadd.s32 %v220, 1
        %v225 = vsel %vm223, %v224, %v220
        %v226 = vadd.s32 %v221, %v225
        %v227 = vadd.s32 %v226, 536870912
        %v228 = vshrl.u32 %v227, 30
        %v229 = vshll.u32 %v228, 30
        %v230 = vsub.s32 %v226, %v229
        %vm231 = vcmp.lt.s32.totalorder %v230, 0
        %v232 = vsub.s32 0, %v230
        %v233 = vsel %vm231, %v232, %v230
        %v234 = vclz %v233
        %v235 = vsub.s32 %v234, 2
        %vm236 = vcmp.gt.s32.totalorder 0, %v235
        %v237 = vsel %vm236, 0, %v235
        %v238 = vsub.s32 32, %v237
        %v239 = vshll.u32 %v230, %v237
        %v240 = vshrl.u32 %v222, %v238
        %v241 = vor.u32 %v239, %v240
        %v242 = vsub.s32 4294967266, %v237
        %v243 = vadd.s32 %v242, 127
        %v244 = vshll.u32 %v243, 23
        %v245 = vor.u32 4788187, %v244
        %v246 = vand.u32 2147483647, %v245
        %v248 = vcvt.s32.f32 %v241
        %v249 = vmul.f32 %v248, %v246
        %v250 = vxor.u32 %v249, 2147483648
        %v251 = vsel %vm130, %v250, %v249
        %v252 = vsub.s32 4, %v228
        %v253 = vsel %vm130, %v252, %v228
        %v254 = vsel %vm129, %v125, %v251
        %v255 = vsel %vm129, 0, %v253
        %v256 = vmul.f32 %v254, %v254
        %v257 = vmul.f32 %v256, -0.001358992
        %v258 = vadd.f32 %v257, 0.041655596
        %v259 = vmul.f32 %v256, %v258
        %v260 = vadd.f32 %v259, -0.4999988
        %v261 = vmul.f32 %v256, %v260
        %v262 = vadd.f32 1.0, %v261
        %v263 = vmul.f32 %v254, %v254
        %v264 = vmul.f32 %v263, -0.00019511016
        %v265 = vadd.f32 %v264, 0.008332121
        %v266 = vmul.f32 %v263, %v265
        %v267 = vadd.f32 %v266, -0.16666654
        %v268 = vmul.f32 %v263, %v267
        %v269 = vadd.f32 %v268, 1.0
        %v270 = vmul.f32 %v269, %v254
        %vm271 = vweird.f32 %v125
        %v272 = vand.u32 %v255, 3
        %vm273 = vcmp.lt.s32.totalorder %v272, 2
        %vm274 = vcmp.eq.s32.totalorder %v272, 0
        %v275 = vxor.u32 %v270, 2147483648
        %v276 = vsel %vm274, %v262, %v275
        %vm277 = vcmp.eq.s32.totalorder %v272, 2
        %v278 = vxor.u32 %v262, 2147483648
        %v279 = vsel %vm277, %v278, %v270
        %v280 = vsel %vm273, %v276, %v279
        %v281 = vsel %vm271, nan, %v280
        %v282 = vand.u32 2147483647, %v127
        %vm283 = vcmp.le.f32.partialorder %v282, 0.7853982
        %vm284 = vcmp.lt.s32.totalorder %v127, 0
        %v285 = vand.u32 %v127, 2139095040
        %v286 = vshrl.u32 %v285, 23
        %v287 = vsub.s32 %v286, 127
        %v288 = vand.u32 2147483647, %v127
        %v289 = vand.u32 %v288, 8388607
        %v290 = vor.u32 %v289, 8388608
        %v291 = vsub.s32 0, %v290
        %v292 = vadd.s32 %v287, 1
        %vm293 = vcmp.gt.s32.totalorder %v292, 0
        %v294 = vsel %vm293, %v292, 0
        %v295 = vshrl.u32 %v294, 5
        %v296 = vand.u32 %v294, 31
        %v297 = vsub.s32 32, %v296
        %v298 = vshrl.u32 683565275, %v297
        %v299 = vshll.u32 683565275, %v296
        %v300 = vshrl.u32 2475754826, %v297
        %v301 = vor.u32 %v299, %v300
        %v302 = vshll.u32 2475754826, %v296
        %v303 = vshrl.u32 2131351028, %v297
        %v304 = vor.u32 %v302, %v303
        %v305 = vshll.u32 2131351028, %v296
        %v306 = vshrl.u32 2102212464, %v297
        %v307 = vor.u32 %v305, %v306
        %v308 = vshll.u32 2102212464, %v296
        %v309 = vshrl.u32 920167782, %v297
        %v310 = vor.u32 %v308, %v309
        %v311 = vshll.u32 920167782, %v296
        %v312 = vshrl.u32 1326507024, %v297
        %v313 = vor.u32 %v311, %v312
        %vm314 = vcmp.lt.s32.totalorder %v295, 1
        %vm315 = vcmp.lt.s32.totalorder %v295, 2
        %vm316 = vcmp.lt.s32.totalorder %v295, 3
        %vm317 = vcmp.lt.s32.totalorder %v295, 4
        %v318 = vsel %vm314, %v298, %v301
        %v319 = vsel %vm317, %v307, 2102212464
        %v320 = vsel %vm316, %v304, %v319
        %v321 = vsel %vm315, %v318, %v320
        %v322 = vsel %vm314, %v301, %v304
        %v323 = vsel %vm317, %v310, 920167782
        %v324 = vsel %vm316, %v307, %v323
        %v325 = vsel %vm315, %v322, %v324
        %v326 = vsel %vm314, %v304, %v307
        %v327 = vsel %vm317, %v313, 1326507024
        %v328 = vsel %vm316, %v310, %v327
        %v329 = vsel %vm315, %v326, %v328
        %v330 = vshll.u32 %v290, 8
        %v331 = vand.u32 %v330, 65535
        %v332 = vshrl.u32 %v330, 16
        %v333 = vand.u32 %v329, 65535
        %v334 = vshrl.u32 %v329, 16
        %v335 = vmul.u32 %v331, %v333
        %v336 = vmul.u32 %v331, %v334
        %v337 = vmul.u32 %v332, %v333
        %v338 = vmul.u32 %v332, %v334
        %v339 = vshll.u32 %v336, 16
        %v340 = vshrl.u32 %v336, 16
        %v341 = vshll.u32 %v337, 16
        %v342 = vshrl.u32 %v337, 16
        %vm343 = vc.u32 %v335, %v339
        %v344 = vsel %vm343, 1, 0
        %v345 = vadd.s32 %v335, %v339
        %v346 = vadd.s32 %v338, %v344
        %vm347 = vc.u32 %v345, %v341
        %v348 = vsel %vm347, 1, 0
        %v349 = vadd.s32 %v345, %v341
        %v350 = vadd.s32 %v346, %v348
        %v351 = vadd.s32 %v350, %v340
        %v352 = vadd.s32 %v351, %v342
        %v353 = vand.u32 %v330, 65535
        %v354 = vshrl.u32 %v330, 16
        %v355 = vand.u32 %v325, 65535
        %v356 = vshrl.u32 %v325, 16
        %v357 = vmul.u32 %v353, %v355
        %v358 = vmul.u32 %v353, %v356
        %v359 = vmul.u32 %v354, %v355
        %v360 = vmul.u32 %v354, %v356
        %v361 = vshll.u32 %v358, 16
        %v362 = vshrl.u32 %v358, 16
        %v363 = vshll.u32 %v359, 16
        %v364 = vshrl.u32 %v359, 16
        %vm365 = vc.u32 %v357, %v361
        %v366 = vsel %vm365, 1, 0
        %v367 = vadd.s32 %v357, %v361
        %v368 = vadd.s32 %v360, %v366
        %vm369 = vc.u32 %v367, %v363
        %v370 = vsel %vm369, 1, 0
        %v371 = vadd.s32 %v367, %v363
        %v372 = vadd.s32 %v368, %v370
        %v373 = vadd.s32 %v372, %v362
        %v374 = vadd.s32 %v373, %v364
        %v375 = vmul.u32 %v330, %v321
        %v376 = vadd.s32 %v352, %v371
        %vm377 = vc.u32 %v352, %v371
        %v378 = vadd.s32 %v374, 1
        %v379 = vsel %vm377, %v378, %v374
        %v380 = vadd.s32 %v375, %v379
        %v381 = vadd.s32 %v380, 536870912
        %v382 = vshrl.u32 %v381, 30
        %v383 = vshll.u32 %v382, 30
        %v384 = vsub.s32 %v380, %v383
        %vm385 = vcmp.lt.s32.totalorder %v384, 0
        %v386 = vsub.s32 0, %v384
        %v387 = vsel %vm385, %v386, %v384
        %v388 = vclz %v387
        %v389 = vsub.s32 %v388, 2
        %vm390 = vcmp.gt.s32.totalorder 0, %v389
        %v391 = vsel %vm390, 0, %v389
        %v392 = vsub.s32 32, %v391
        %v393 = vshll.u32 %v384, %v391
        %v394 = vshrl.u32 %v376, %v392
        %v395 = vor.u32 %v393, %v394
        %v396 = vsub.s32 4294967266, %v391
        %v397 = vadd.s32 %v396, 127
        %v398 = vshll.u32 %v397, 23
        %v399 = vor.u32 4788187, %v398
        %v400 = vand.u32 2147483647, %v399
        %v402 = vcvt.s32.f32 %v395
        %v403 = vmul.f32 %v402, %v400
        %v404 = vxor.u32 %v403, 2147483648
        %v405 = vsel %vm284, %v404, %v403
        %v406 = vsub.s32 4, %v382
        %v407 = vsel %vm284, %v406, %v382
        %v408 = vsel %vm283, %v127, %v405
        %v409 = vsel %vm283, 0, %v407
        %v410 = vmul.f32 %v408, %v408
        %v411 = vmul.f32 %v410, -0.001358992
        %v412 = vadd.f32 %v411, 0.041655596
        %v413 = vmul.f32 %v410, %v412
        %v414 = vadd.f32 %v413, -0.4999988
        %v415 = vmul.f32 %v410, %v414
        %v416 = vadd.f32 1.0, %v415
        %v417 = vmul.f32 %v408, %v408
        %v418 = vmul.f32 %v417, -0.00019511016
        %v419 = vadd.f32 %v418, 0.008332121
        %v420 = vmul.f32 %v417, %v419
        %v421 = vadd.f32 %v420, -0.16666654
        %v422 = vmul.f32 %v417, %v421
        %v423 = vadd.f32 %v422, 1.0
        %v424 = vmul.f32 %v423, %v408
        %vm425 = vweird.f32 %v127
        %v426 = vand.u32 %v409, 3
        %vm427 = vcmp.lt.s32.totalorder %v426, 2
        %vm428 = vcmp.eq.s32.totalorder %v426, 0
        %v429 = vxor.u32 %v424, 2147483648
        %v430 = vsel %vm428, %v416, %v429
        %vm431 = vcmp.eq.s32.totalorder %v426, 2
        %v432 = vxor.u32 %v416, 2147483648
        %v433 = vsel %vm431, %v432, %v424
        %v434 = vsel %vm427, %v430, %v433
        %v435 = vsel %vm425, nan, %v434
        %v436 = vmul.f32 %v281, %v435
        %v437 = vand.u32 2147483647, %v125
        %vm438 = vcmp.le.f32.partialorder %v437, 0.7853982
        %vm439 = vcmp.lt.s32.totalorder %v125, 0
        %v440 = vand.u32 %v125, 2139095040
        %v441 = vshrl.u32 %v440, 23
        %v442 = vsub.s32 %v441, 127
        %v443 = vand.u32 2147483647, %v125
        %v444 = vand.u32 %v443, 8388607
        %v445 = vor.u32 %v444, 8388608
        %v446 = vsub.s32 0, %v445
        %v447 = vadd.s32 %v442, 1
        %vm448 = vcmp.gt.s32.totalorder %v447, 0
        %v449 = vsel %vm448, %v447, 0
        %v450 = vshrl.u32 %v449, 5
        %v451 = vand.u32 %v449, 31
        %v452 = vsub.s32 32, %v451
        %v453 = vshrl.u32 683565275, %v452
        %v454 = vshll.u32 683565275, %v451
        %v455 = vshrl.u32 2475754826, %v452
        %v456 = vor.u32 %v454, %v455
        %v457 = vshll.u32 2475754826, %v451
        %v458 = vshrl.u32 2131351028, %v452
        %v459 = vor.u32 %v457, %v458
        %v460 = vshll.u32 2131351028, %v451
        %v461 = vshrl.u32 2102212464, %v452
        %v462 = vor.u32 %v460, %v461
        %v463 = vshll.u32 2102212464, %v451
        %v464 = vshrl.u32 920167782, %v452
        %v465 = vor.u32 %v463, %v464
        %v466 = vshll.u32 920167782, %v451
        %v467 = vshrl.u32 1326507024, %v452
        %v468 = vor.u32 %v466, %v467
        %vm469 = vcmp.lt.s32.totalorder %v450, 1
        %vm470 = vcmp.lt.s32.totalorder %v450, 2
        %vm471 = vcmp.lt.s32.totalorder %v450, 3
        %vm472 = vcmp.lt.s32.totalorder %v450, 4
        %v473 = vsel %vm469, %v453, %v456
        %v474 = vsel %vm472, %v462, 2102212464
        %v475 = vsel %vm471, %v459, %v474
        %v476 = vsel %vm470, %v473, %v475
        %v477 = vsel %vm469, %v456, %v459
        %v478 = vsel %vm472, %v465, 920167782
        %v479 = vsel %vm471, %v462, %v478
        %v480 = vsel %vm470, %v477, %v479
        %v481 = vsel %vm469, %v459, %v462
        %v482 = vsel %vm472, %v468, 1326507024
        %v483 = vsel %vm471, %v465, %v482
        %v484 = vsel %vm470, %v481, %v483
        %v485 = vshll.u32 %v445, 8
        %v486 = vand.u32 %v485, 65535
        %v487 = vshrl.u32 %v485, 16
        %v488 = vand.u32 %v484, 65535
        %v489 = vshrl.u32 %v484, 16
        %v490 = vmul.u32 %v486, %v488
        %v491 = vmul.u32 %v486, %v489
        %v492 = vmul.u32 %v487, %v488
        %v493 = vmul.u32 %v487, %v489
        %v494 = vshll.u32 %v491, 16
        %v495 = vshrl.u32 %v491, 16
        %v496 = vshll.u32 %v492, 16
        %v497 = vshrl.u32 %v492, 16
        %vm498 = vc.u32 %v490, %v494
        %v499 = vsel %vm498, 1, 0
        %v500 = vadd.s32 %v490, %v494
        %v501 = vadd.s32 %v493, %v499
        %vm502 = vc.u32 %v500, %v496
        %v503 = vsel %vm502, 1, 0
        %v504 = vadd.s32 %v500, %v496
        %v505 = vadd.s32 %v501, %v503
        %v506 = vadd.s32 %v505, %v495
        %v507 = vadd.s32 %v506, %v497
        %v508 = vand.u32 %v485, 65535
        %v509 = vshrl.u32 %v485, 16
        %v510 = vand.u32 %v480, 65535
        %v511 = vshrl.u32 %v480, 16
        %v512 = vmul.u32 %v508, %v510
        %v513 = vmul.u32 %v508, %v511
        %v514 = vmul.u32 %v509, %v510
        %v515 = vmul.u32 %v509, %v511
        %v516 = vshll.u32 %v513, 16
        %v517 = vshrl.u32 %v513, 16
        %v518 = vshll.u32 %v514, 16
        %v519 = vshrl.u32 %v514, 16
        %vm520 = vc.u32 %v512, %v516
        %v521 = vsel %vm520, 1, 0
        %v522 = vadd.s32 %v512, %v516
        %v523 = vadd.s32 %v515, %v521
        %vm524 = vc.u32 %v522, %v518
        %v525 = vsel %vm524, 1, 0
        %v526 = vadd.s32 %v522, %v518
        %v527 = vadd.s32 %v523, %v525
        %v528 = vadd.s32 %v527, %v517
        %v529 = vadd.s32 %v528, %v519
        %v530 = vmul.u32 %v485, %v476
        %v531 = vadd.s32 %v507, %v526
        %vm532 = vc.u32 %v507, %v526
        %v533 = vadd.s32 %v529, 1
        %v534 = vsel %vm532, %v533, %v529
        %v535 = vadd.s32 %v530, %v534
        %v536 = vadd.s32 %v535, 536870912
        %v537 = vshrl.u32 %v536, 30
        %v538 = vshll.u32 %v537, 30
        %v539 = vsub.s32 %v535, %v538
        %vm540 = vcmp.lt.s32.totalorder %v539, 0
        %v541 = vsub.s32 0, %v539
        %v542 = vsel %vm540, %v541, %v539
        %v543 = vclz %v542
        %v544 = vsub.s32 %v543, 2
        %vm545 = vcmp.gt.s32.totalorder 0, %v544
        %v546 = vsel %vm545, 0, %v544
        %v547 = vsub.s32 32, %v546
        %v548 = vshll.u32 %v539, %v546
        %v549 = vshrl.u32 %v531, %v547
        %v550 = vor.u32 %v548, %v549
        %v551 = vsub.s32 4294967266, %v546
        %v552 = vadd.s32 %v551, 127
        %v553 = vshll.u32 %v552, 23
        %v554 = vor.u32 4788187, %v553
        %v555 = vand.u32 2147483647, %v554
        %v557 = vcvt.s32.f32 %v550
        %v558 = vmul.f32 %v557, %v555
        %v559 = vxor.u32 %v558, 2147483648
        %v560 = vsel %vm439, %v559, %v558
        %v561 = vsub.s32 4, %v537
        %v562 = vsel %vm439, %v561, %v537
        %v563 = vsel %vm438, %v125, %v560
        %v564 = vsel %vm438, 0, %v562
        %v565 = vmul.f32 %v563, %v563
        %v566 = vmul.f32 %v565, -0.001358992
        %v567 = vadd.f32 %v566, 0.041655596
        %v568 = vmul.f32 %v565, %v567
        %v569 = vadd.f32 %v568, -0.4999988
        %v570 = vmul.f32 %v565, %v569
        %v571 = vadd.f32 1.0, %v570
        %v572 = vmul.f32 %v563, %v563
        %v573 = vmul.f32 %v572, -0.00019511016
        %v574 = vadd.f32 %v573, 0.008332121
        %v575 = vmul.f32 %v572, %v574
        %v576 = vadd.f32 %v575, -0.16666654
        %v577 = vmul.f32 %v572, %v576
        %v578 = vadd.f32 %v577, 1.0
        %v579 = vmul.f32 %v578, %v563
        %vm580 = vweird.f32 %v125
        %v581 = vadd.s32 %v564, 3
        %v582 = vand.u32 %v581, 3
        %vm583 = vcmp.lt.s32.totalorder %v582, 2
        %vm584 = vcmp.eq.s32.totalorder %v582, 0
        %v585 = vxor.u32 %v579, 2147483648
        %v586 = vsel %vm584, %v571, %v585
        %vm587 = vcmp.eq.s32.totalorder %v582, 2
        %v588 = vxor.u32 %v571, 2147483648
        %v589 = vsel %vm587, %v588, %v579
        %v590 = vsel %vm583, %v586, %v589
        %v591 = vsel %vm580, nan, %v590
        %v592 = vand.u32 2147483647, %v127
        %vm593 = vcmp.le.f32.partialorder %v592, 0.7853982
        %vm594 = vcmp.lt.s32.totalorder %v127, 0
        %v595 = vand.u32 %v127, 2139095040
        %v596 = vshrl.u32 %v595, 23
        %v597 = vsub.s32 %v596, 127
        %v598 = vand.u32 2147483647, %v127
        %v599 = vand.u32 %v598, 8388607
        %v600 = vor.u32 %v599, 8388608
        %v601 = vsub.s32 0, %v600
        %v602 = vadd.s32 %v597, 1
        %vm603 = vcmp.gt.s32.totalorder %v602, 0
        %v604 = vsel %vm603, %v602, 0
        %v605 = vshrl.u32 %v604, 5
        %v606 = vand.u32 %v604, 31
        %v607 = vsub.s32 32, %v606
        %v608 = vshrl.u32 683565275, %v607
        %v609 = vshll.u32 683565275, %v606
        %v610 = vshrl.u32 2475754826, %v607
        %v611 = vor.u32 %v609, %v610
        %v612 = vshll.u32 2475754826, %v606
        %v613 = vshrl.u32 2131351028, %v607
        %v614 = vor.u32 %v612, %v613
        %v615 = vshll.u32 2131351028, %v606
        %v616 = vshrl.u32 2102212464, %v607
        %v617 = vor.u32 %v615, %v616
        %v618 = vshll.u32 2102212464, %v606
        %v619 = vshrl.u32 920167782, %v607
        %v620 = vor.u32 %v618, %v619
        %v621 = vshll.u32 920167782, %v606
        %v622 = vshrl.u32 1326507024, %v607
        %v623 = vor.u32 %v621, %v622
        %vm624 = vcmp.lt.s32.totalorder %v605, 1
        %vm625 = vcmp.lt.s32.totalorder %v605, 2
        %vm626 = vcmp.lt.s32.totalorder %v605, 3
        %vm627 = vcmp.lt.s32.totalorder %v605, 4
        %v628 = vsel %vm624, %v608, %v611
        %v629 = vsel %vm627, %v617, 2102212464
        %v630 = vsel %vm626, %v614, %v629
        %v631 = vsel %vm625, %v628, %v630
        %v632 = vsel %vm624, %v611, %v614
        %v633 = vsel %vm627, %v620, 920167782
        %v634 = vsel %vm626, %v617, %v633
        %v635 = vsel %vm625, %v632, %v634
        %v636 = vsel %vm624, %v614, %v617
        %v637 = vsel %vm627, %v623, 1326507024
        %v638 = vsel %vm626, %v620, %v637
        %v639 = vsel %vm625, %v636, %v638
        %v640 = vshll.u32 %v600, 8
        %v641 = vand.u32 %v640, 65535
        %v642 = vshrl.u32 %v640, 16
        %v643 = vand.u32 %v639, 65535
        %v644 = vshrl.u32 %v639, 16
        %v645 = vmul.u32 %v641, %v643
        %v646 = vmul.u32 %v641, %v644
        %v647 = vmul.u32 %v642, %v643
        %v648 = vmul.u32 %v642, %v644
        %v649 = vshll.u32 %v646, 16
        %v650 = vshrl.u32 %v646, 16
        %v651 = vshll.u32 %v647, 16
        %v652 = vshrl.u32 %v647, 16
        %vm653 = vc.u32 %v645, %v649
        %v654 = vsel %vm653, 1, 0
        %v655 = vadd.s32 %v645, %v649
        %v656 = vadd.s32 %v648, %v654
        %vm657 = vc.u32 %v655, %v651
        %v658 = vsel %vm657, 1, 0
        %v659 = vadd.s32 %v655, %v651
        %v660 = vadd.s32 %v656, %v658
        %v661 = vadd.s32 %v660, %v650
        %v662 = vadd.s32 %v661, %v652
        %v663 = vand.u32 %v640, 65535
        %v664 = vshrl.u32 %v640, 16
        %v665 = vand.u32 %v635, 65535
        %v666 = vshrl.u32 %v635, 16
        %v667 = vmul.u32 %v663, %v665
        %v668 = vmul.u32 %v663, %v666
        %v669 = vmul.u32 %v664, %v665
        %v670 = vmul.u32 %v664, %v666
        %v671 = vshll.u32 %v668, 16
        %v672 = vshrl.u32 %v668, 16
        %v673 = vshll.u32 %v669, 16
        %v674 = vshrl.u32 %v669, 16
        %vm675 = vc.u32 %v667, %v671
        %v676 = vsel %vm675, 1, 0
        %v677 = vadd.s32 %v667, %v671
        %v678 = vadd.s32 %v670, %v676
        %vm679 = vc.u32 %v677, %v673
        %v680 = vsel %vm679, 1, 0
        %v681 = vadd.s32 %v677, %v673
        %v682 = vadd.s32 %v678, %v680
        %v683 = vadd.s32 %v682, %v672
        %v684 = vadd.s32 %v683, %v674
        %v685 = vmul.u32 %v640, %v631
        %v686 = vadd.s32 %v662, %v681
        %vm687 = vc.u32 %v662, %v681
        %v688 = vadd.s32 %v684, 1
        %v689 = vsel %vm687, %v688, %v684
        %v690 = vadd.s32 %v685, %v689
        %v691 = vadd.s32 %v690, 536870912
        %v692 = vshrl.u32 %v691, 30
        %v693 = vshll.u32 %v692, 30
        %v694 = vsub.s32 %v690, %v693
        %vm695 = vcmp.lt.s32.totalorder %v694, 0
        %v696 = vsub.s32 0, %v694
        %v697 = vsel %vm695, %v696, %v694
        %v698 = vclz %v697
        %v699 = vsub.s32 %v698, 2
        %vm700 = vcmp.gt.s32.totalorder 0, %v699
        %v701 = vsel %vm700, 0, %v699
        %v702 = vsub.s32 32, %v701
        %v703 = vshll.u32 %v694, %v701
        %v704 = vshrl.u32 %v686, %v702
        %v705 = vor.u32 %v703, %v704
        %v706 = vsub.s32 4294967266, %v701
        %v707 = vadd.s32 %v706, 127
        %v708 = vshll.u32 %v707, 23
        %v709 = vor.u32 4788187, %v708
        %v710 = vand.u32 2147483647, %v709
        %v712 = vcvt.s32.f32 %v705
        %v713 = vmul.f32 %v712, %v710
        %v714 = vxor.u32 %v713, 2147483648
        %v715 = vsel %vm594, %v714, %v713
        %v716 = vsub.s32 4, %v692
        %v717 = vsel %vm594, %v716, %v692
        %v718 = vsel %vm593, %v127, %v715
        %v719 = vsel %vm593, 0, %v717
        %v720 = vmul.f32 %v718, %v718
        %v721 = vmul.f32 %v720, -0.001358992
        %v722 = vadd.f32 %v721, 0.041655596
        %v723 = vmul.f32 %v720, %v722
        %v724 = vadd.f32 %v723, -0.4999988
        %v725 = vmul.f32 %v720, %v724
        %v726 = vadd.f32 1.0, %v725
        %v727 = vmul.f32 %v718, %v718
        %v728 = vmul.f32 %v727, -0.00019511016
        %v729 = vadd.f32 %v728, 0.008332121
        %v730 = vmul.f32 %v727, %v729
        %v731 = vadd.f32 %v730, -0.16666654
        %v732 = vmul.f32 %v727, %v731
        %v733 = vadd.f32 %v732, 1.0
        %v734 = vmul.f32 %v733, %v718
        %vm735 = vweird.f32 %v127
        %v736 = vadd.s32 %v719, 3
        %v737 = vand.u32 %v736, 3
        %vm738 = vcmp.lt.s32.totalorder %v737, 2
        %vm739 = vcmp.eq.s32.totalorder %v737, 0
        %v740 = vxor.u32 %v734, 2147483648
        %v741 = vsel %vm739, %v726, %v740
        %vm742 = vcmp.eq.s32.totalorder %v737, 2
        %v743 = vxor.u32 %v726, 2147483648
        %v744 = vsel %vm742, %v743, %v734
        %v745 = vsel %vm738, %v741, %v744
        %v746 = vsel %vm735, nan, %v745
        %v747 = vmul.f32 %v591, %v746
        %v748 = vsub.f32 %v436, %v747
        %v749 = vmul.f32 %v121, %v748
        %s750 = sadd.s32 %s77, 5
        %s751 = sld [smem:[#allocation3 + %s750]]
        %s752 = sadd.s32 %s77, 6
        %s753 = sld [smem:[#allocation3 + %s752]]
        %s754 = sadd.s32 %s77, 7
        %s755 = sld [smem:[#allocation3 + %s754]]
        %s756 = sadd.s32 %s77, 10
        %s757 = sld [smem:[#allocation3 + %s756]]
        %s758 = sadd.s32 %s77, 11
        %s759 = sld [smem:[#allocation3 + %s758]]
        %v760 = vstv %s751
        %v761 = vmul.f32 %v760, %v95
        %v762 = vstv %s753
        %v763 = vmul.f32 %v762, %v96
        %v764 = vadd.f32 %v761, %v763
        %v765 = vstv %s755
        %v766 = vmul.f32 %v765, %v97
        %v767 = vadd.f32 %v764, %v766
        %v768 = vmul.f32 %v767, 1.442695
        %v769 = vpow.pop %v768
        %v770 = vstv %s757
        %v771 = vmul.f32 %v94, %v770
        %v772 = vadd.f32 %v771, %v124
        %v773 = vstv %s759
        %v774 = vmul.f32 %v90, %v773
        %v775 = vand.u32 2147483647, %v772
        %vm776 = vcmp.le.f32.partialorder %v775, 0.7853982
        %vm777 = vcmp.lt.s32.totalorder %v772, 0
        %v778 = vand.u32 %v772, 2139095040
        %v779 = vshrl.u32 %v778, 23
        %v780 = vsub.s32 %v779, 127
        %v781 = vand.u32 2147483647, %v772
        %v782 = vand.u32 %v781, 8388607
        %v783 = vor.u32 %v782, 8388608
        %v784 = vsub.s32 0, %v783
        %v785 = vadd.s32 %v780, 1
        %vm786 = vcmp.gt.s32.totalorder %v785, 0
        %v787 = vsel %vm786, %v785, 0
        %v788 = vshrl.u32 %v787, 5
        %v789 = vand.u32 %v787, 31
        %v790 = vsub.s32 32, %v789
        %v791 = vshrl.u32 683565275, %v790
        %v792 = vshll.u32 683565275, %v789
        %v793 = vshrl.u32 2475754826, %v790
        %v794 = vor.u32 %v792, %v793
        %v795 = vshll.u32 2475754826, %v789
        %v796 = vshrl.u32 2131351028, %v790
        %v797 = vor.u32 %v795, %v796
        %v798 = vshll.u32 2131351028, %v789
        %v799 = vshrl.u32 2102212464, %v790
        %v800 = vor.u32 %v798, %v799
        %v801 = vshll.u32 2102212464, %v789
        %v802 = vshrl.u32 920167782, %v790
        %v803 = vor.u32 %v801, %v802
        %v804 = vshll.u32 920167782, %v789
        %v805 = vshrl.u32 1326507024, %v790
        %v806 = vor.u32 %v804, %v805
        %vm807 = vcmp.lt.s32.totalorder %v788, 1
        %vm808 = vcmp.lt.s32.totalorder %v788, 2
        %vm809 = vcmp.lt.s32.totalorder %v788, 3
        %vm810 = vcmp.lt.s32.totalorder %v788, 4
        %v811 = vsel %vm807, %v791, %v794
        %v812 = vsel %vm810, %v800, 2102212464
        %v813 = vsel %vm809, %v797, %v812
        %v814 = vsel %vm808, %v811, %v813
        %v815 = vsel %vm807, %v794, %v797
        %v816 = vsel %vm810, %v803, 920167782
        %v817 = vsel %vm809, %v800, %v816
        %v818 = vsel %vm808, %v815, %v817
        %v819 = vsel %vm807, %v797, %v800
        %v820 = vsel %vm810, %v806, 1326507024
        %v821 = vsel %vm809, %v803, %v820
        %v822 = vsel %vm808, %v819, %v821
        %v823 = vshll.u32 %v783, 8
        %v824 = vand.u32 %v823, 65535
        %v825 = vshrl.u32 %v823, 16
        %v826 = vand.u32 %v822, 65535
        %v827 = vshrl.u32 %v822, 16
        %v828 = vmul.u32 %v824, %v826
        %v829 = vmul.u32 %v824, %v827
        %v830 = vmul.u32 %v825, %v826
        %v831 = vmul.u32 %v825, %v827
        %v832 = vshll.u32 %v829, 16
        %v833 = vshrl.u32 %v829, 16
        %v834 = vshll.u32 %v830, 16
        %v835 = vshrl.u32 %v830, 16
        %vm836 = vc.u32 %v828, %v832
        %v837 = vsel %vm836, 1, 0
        %v838 = vadd.s32 %v828, %v832
        %v839 = vadd.s32 %v831, %v837
        %vm840 = vc.u32 %v838, %v834
        %v841 = vsel %vm840, 1, 0
        %v842 = vadd.s32 %v838, %v834
        %v843 = vadd.s32 %v839, %v841
        %v844 = vadd.s32 %v843, %v833
        %v845 = vadd.s32 %v844, %v835
        %v846 = vand.u32 %v823, 65535
        %v847 = vshrl.u32 %v823, 16
        %v848 = vand.u32 %v818, 65535
        %v849 = vshrl.u32 %v818, 16
        %v850 = vmul.u32 %v846, %v848
        %v851 = vmul.u32 %v846, %v849
        %v852 = vmul.u32 %v847, %v848
        %v853 = vmul.u32 %v847, %v849
        %v854 = vshll.u32 %v851, 16
        %v855 = vshrl.u32 %v851, 16
        %v856 = vshll.u32 %v852, 16
        %v857 = vshrl.u32 %v852, 16
        %vm858 = vc.u32 %v850, %v854
        %v859 = vsel %vm858, 1, 0
        %v860 = vadd.s32 %v850, %v854
        %v861 = vadd.s32 %v853, %v859
        %vm862 = vc.u32 %v860, %v856
        %v863 = vsel %vm862, 1, 0
        %v864 = vadd.s32 %v860, %v856
        %v865 = vadd.s32 %v861, %v863
        %v866 = vadd.s32 %v865, %v855
        %v867 = vadd.s32 %v866, %v857
        %v868 = vmul.u32 %v823, %v814
        %v869 = vadd.s32 %v845, %v864
        %vm870 = vc.u32 %v845, %v864
        %v871 = vadd.s32 %v867, 1
        %v872 = vsel %vm870, %v871, %v867
        %v873 = vadd.s32 %v868, %v872
        %v874 = vadd.s32 %v873, 536870912
        %v875 = vshrl.u32 %v874, 30
        %v876 = vshll.u32 %v875, 30
        %v877 = vsub.s32 %v873, %v876
        %vm878 = vcmp.lt.s32.totalorder %v877, 0
        %v879 = vsub.s32 0, %v877
        %v880 = vsel %vm878, %v879, %v877
        %v881 = vclz %v880
        %v882 = vsub.s32 %v881, 2
        %vm883 = vcmp.gt.s32.totalorder 0, %v882
        %v884 = vsel %vm883, 0, %v882
        %v885 = vsub.s32 32, %v884
        %v886 = vshll.u32 %v877, %v884
        %v887 = vshrl.u32 %v869, %v885
        %v888 = vor.u32 %v886, %v887
        %v889 = vsub.s32 4294967266, %v884
        %v890 = vadd.s32 %v889, 127
        %v891 = vshll.u32 %v890, 23
        %v892 = vor.u32 4788187, %v891
        %v893 = vand.u32 2147483647, %v892
        %v895 = vcvt.s32.f32 %v888
        %v896 = vmul.f32 %v895, %v893
        %v897 = vxor.u32 %v896, 2147483648
        %v898 = vsel %vm777, %v897, %v896
        %v899 = vsub.s32 4, %v875
        %v900 = vsel %vm777, %v899, %v875
        %v901 = vsel %vm776, %v772, %v898
        %v902 = vsel %vm776, 0, %v900
        %v903 = vmul.f32 %v901, %v901
        %v904 = vmul.f32 %v903, -0.001358992
        %v905 = vadd.f32 %v904, 0.041655596
        %v906 = vmul.f32 %v903, %v905
        %v907 = vadd.f32 %v906, -0.4999988
        %v908 = vmul.f32 %v903, %v907
        %v909 = vadd.f32 1.0, %v908
        %v910 = vmul.f32 %v901, %v901
        %v911 = vmul.f32 %v910, -0.00019511016
        %v912 = vadd.f32 %v911, 0.008332121
        %v913 = vmul.f32 %v910, %v912
        %v914 = vadd.f32 %v913, -0.16666654
        %v915 = vmul.f32 %v910, %v914
        %v916 = vadd.f32 %v915, 1.0
        %v917 = vmul.f32 %v916, %v901
        %vm918 = vweird.f32 %v772
        %v919 = vand.u32 %v902, 3
        %vm920 = vcmp.lt.s32.totalorder %v919, 2
        %vm921 = vcmp.eq.s32.totalorder %v919, 0
        %v922 = vxor.u32 %v917, 2147483648
        %v923 = vsel %vm921, %v909, %v922
        %vm924 = vcmp.eq.s32.totalorder %v919, 2
        %v925 = vxor.u32 %v909, 2147483648
        %v926 = vsel %vm924, %v925, %v917
        %v927 = vsel %vm920, %v923, %v926
        %v928 = vsel %vm918, nan, %v927
        %v929 = vand.u32 2147483647, %v774
        %vm930 = vcmp.le.f32.partialorder %v929, 0.7853982
        %vm931 = vcmp.lt.s32.totalorder %v774, 0
        %v932 = vand.u32 %v774, 2139095040
        %v933 = vshrl.u32 %v932, 23
        %v934 = vsub.s32 %v933, 127
        %v935 = vand.u32 2147483647, %v774
        %v936 = vand.u32 %v935, 8388607
        %v937 = vor.u32 %v936, 8388608
        %v938 = vsub.s32 0, %v937
        %v939 = vadd.s32 %v934, 1
        %vm940 = vcmp.gt.s32.totalorder %v939, 0
        %v941 = vsel %vm940, %v939, 0
        %v942 = vshrl.u32 %v941, 5
        %v943 = vand.u32 %v941, 31
        %v944 = vsub.s32 32, %v943
        %v945 = vshrl.u32 683565275, %v944
        %v946 = vshll.u32 683565275, %v943
        %v947 = vshrl.u32 2475754826, %v944
        %v948 = vor.u32 %v946, %v947
        %v949 = vshll.u32 2475754826, %v943
        %v950 = vshrl.u32 2131351028, %v944
        %v951 = vor.u32 %v949, %v950
        %v952 = vshll.u32 2131351028, %v943
        %v953 = vshrl.u32 2102212464, %v944
        %v954 = vor.u32 %v952, %v953
        %v955 = vshll.u32 2102212464, %v943
        %v956 = vshrl.u32 920167782, %v944
        %v957 = vor.u32 %v955, %v956
        %v958 = vshll.u32 920167782, %v943
        %v959 = vshrl.u32 1326507024, %v944
        %v960 = vor.u32 %v958, %v959
        %vm961 = vcmp.lt.s32.totalorder %v942, 1
        %vm962 = vcmp.lt.s32.totalorder %v942, 2
        %vm963 = vcmp.lt.s32.totalorder %v942, 3
        %vm964 = vcmp.lt.s32.totalorder %v942, 4
        %v965 = vsel %vm961, %v945, %v948
        %v966 = vsel %vm964, %v954, 2102212464
        %v967 = vsel %vm963, %v951, %v966
        %v968 = vsel %vm962, %v965, %v967
        %v969 = vsel %vm961, %v948, %v951
        %v970 = vsel %vm964, %v957, 920167782
        %v971 = vsel %vm963, %v954, %v970
        %v972 = vsel %vm962, %v969, %v971
        %v973 = vsel %vm961, %v951, %v954
        %v974 = vsel %vm964, %v960, 1326507024
        %v975 = vsel %vm963, %v957, %v974
        %v976 = vsel %vm962, %v973, %v975
        %v977 = vshll.u32 %v937, 8
        %v978 = vand.u32 %v977, 65535
        %v979 = vshrl.u32 %v977, 16
        %v980 = vand.u32 %v976, 65535
        %v981 = vshrl.u32 %v976, 16
        %v982 = vmul.u32 %v978, %v980
        %v983 = vmul.u32 %v978, %v981
        %v984 = vmul.u32 %v979, %v980
        %v985 = vmul.u32 %v979, %v981
        %v986 = vshll.u32 %v983, 16
        %v987 = vshrl.u32 %v983, 16
        %v988 = vshll.u32 %v984, 16
        %v989 = vshrl.u32 %v984, 16
        %vm990 = vc.u32 %v982, %v986
        %v991 = vsel %vm990, 1, 0
        %v992 = vadd.s32 %v982, %v986
        %v993 = vadd.s32 %v985, %v991
        %vm994 = vc.u32 %v992, %v988
        %v995 = vsel %vm994, 1, 0
        %v996 = vadd.s32 %v992, %v988
        %v997 = vadd.s32 %v993, %v995
        %v998 = vadd.s32 %v997, %v987
        %v999 = vadd.s32 %v998, %v989
        %v1000 = vand.u32 %v977, 65535
        %v1001 = vshrl.u32 %v977, 16
        %v1002 = vand.u32 %v972, 65535
        %v1003 = vshrl.u32 %v972, 16
        %v1004 = vmul.u32 %v1000, %v1002
        %v1005 = vmul.u32 %v1000, %v1003
        %v1006 = vmul.u32 %v1001, %v1002
        %v1007 = vmul.u32 %v1001, %v1003
        %v1008 = vshll.u32 %v1005, 16
        %v1009 = vshrl.u32 %v1005, 16
        %v1010 = vshll.u32 %v1006, 16
        %v1011 = vshrl.u32 %v1006, 16
        %vm1012 = vc.u32 %v1004, %v1008
        %v1013 = vsel %vm1012, 1, 0
        %v1014 = vadd.s32 %v1004, %v1008
        %v1015 = vadd.s32 %v1007, %v1013
        %vm1016 = vc.u32 %v1014, %v1010
        %v1017 = vsel %vm1016, 1, 0
        %v1018 = vadd.s32 %v1014, %v1010
        %v1019 = vadd.s32 %v1015, %v1017
        %v1020 = vadd.s32 %v1019, %v1009
        %v1021 = vadd.s32 %v1020, %v1011
        %v1022 = vmul.u32 %v977, %v968
        %v1023 = vadd.s32 %v999, %v1018
        %vm1024 = vc.u32 %v999, %v1018
        %v1025 = vadd.s32 %v1021, 1
        %v1026 = vsel %vm1024, %v1025, %v1021
        %v1027 = vadd.s32 %v1022, %v1026
        %v1028 = vadd.s32 %v1027, 536870912
        %v1029 = vshrl.u32 %v1028, 30
        %v1030 = vshll.u32 %v1029, 30
        %v1031 = vsub.s32 %v1027, %v1030
        %vm1032 = vcmp.lt.s32.totalorder %v1031, 0
        %v1033 = vsub.s32 0, %v1031
        %v1034 = vsel %vm1032, %v1033, %v1031
        %v1035 = vclz %v1034
        %v1036 = vsub.s32 %v1035, 2
        %vm1037 = vcmp.gt.s32.totalorder 0, %v1036
        %v1038 = vsel %vm1037, 0, %v1036
        %v1039 = vsub.s32 32, %v1038
        %v1040 = vshll.u32 %v1031, %v1038
        %v1041 = vshrl.u32 %v1023, %v1039
        %v1042 = vor.u32 %v1040, %v1041
        %v1043 = vsub.s32 4294967266, %v1038
        %v1044 = vadd.s32 %v1043, 127
        %v1045 = vshll.u32 %v1044, 23
        %v1046 = vor.u32 4788187, %v1045
        %v1047 = vand.u32 2147483647, %v1046
        %v1049 = vcvt.s32.f32 %v1042
        %v1050 = vmul.f32 %v1049, %v1047
        %v1051 = vxor.u32 %v1050, 2147483648
        %v1052 = vsel %vm931, %v1051, %v1050
        %v1053 = vsub.s32 4, %v1029
        %v1054 = vsel %vm931, %v1053, %v1029
        %v1055 = vsel %vm930, %v774, %v1052
        %v1056 = vsel %vm930, 0, %v1054
        %v1057 = vmul.f32 %v1055, %v1055
        %v1058 = vmul.f32 %v1057, -0.001358992
        %v1059 = vadd.f32 %v1058, 0.041655596
        %v1060 = vmul.f32 %v1057, %v1059
        %v1061 = vadd.f32 %v1060, -0.4999988
        %v1062 = vmul.f32 %v1057, %v1061
        %v1063 = vadd.f32 1.0, %v1062
        %v1064 = vmul.f32 %v1055, %v1055
        %v1065 = vmul.f32 %v1064, -0.00019511016
        %v1066 = vadd.f32 %v1065, 0.008332121
        %v1067 = vmul.f32 %v1064, %v1066
        %v1068 = vadd.f32 %v1067, -0.16666654
        %v1069 = vmul.f32 %v1064, %v1068
        %v1070 = vadd.f32 %v1069, 1.0
        %v1071 = vmul.f32 %v1070, %v1055
        %vm1072 = vweird.f32 %v774
        %v1073 = vand.u32 %v1056, 3
        %vm1074 = vcmp.lt.s32.totalorder %v1073, 2
        %vm1075 = vcmp.eq.s32.totalorder %v1073, 0
        %v1076 = vxor.u32 %v1071, 2147483648
        %v1077 = vsel %vm1075, %v1063, %v1076
        %vm1078 = vcmp.eq.s32.totalorder %v1073, 2
        %v1079 = vxor.u32 %v1063, 2147483648
        %v1080 = vsel %vm1078, %v1079, %v1071
        %v1081 = vsel %vm1074, %v1077, %v1080
        %v1082 = vsel %vm1072, nan, %v1081
        %v1083 = vmul.f32 %v928, %v1082
        %v1084 = vand.u32 2147483647, %v772
        %vm1085 = vcmp.le.f32.partialorder %v1084, 0.7853982
        %vm1086 = vcmp.lt.s32.totalorder %v772, 0
        %v1087 = vand.u32 %v772, 2139095040
        %v1088 = vshrl.u32 %v1087, 23
        %v1089 = vsub.s32 %v1088, 127
        %v1090 = vand.u32 2147483647, %v772
        %v1091 = vand.u32 %v1090, 8388607
        %v1092 = vor.u32 %v1091, 8388608
        %v1093 = vsub.s32 0, %v1092
        %v1094 = vadd.s32 %v1089, 1
        %vm1095 = vcmp.gt.s32.totalorder %v1094, 0
        %v1096 = vsel %vm1095, %v1094, 0
        %v1097 = vshrl.u32 %v1096, 5
        %v1098 = vand.u32 %v1096, 31
        %v1099 = vsub.s32 32, %v1098
        %v1100 = vshrl.u32 683565275, %v1099
        %v1101 = vshll.u32 683565275, %v1098
        %v1102 = vshrl.u32 2475754826, %v1099
        %v1103 = vor.u32 %v1101, %v1102
        %v1104 = vshll.u32 2475754826, %v1098
        %v1105 = vshrl.u32 2131351028, %v1099
        %v1106 = vor.u32 %v1104, %v1105
        %v1107 = vshll.u32 2131351028, %v1098
        %v1108 = vshrl.u32 2102212464, %v1099
        %v1109 = vor.u32 %v1107, %v1108
        %v1110 = vshll.u32 2102212464, %v1098
        %v1111 = vshrl.u32 920167782, %v1099
        %v1112 = vor.u32 %v1110, %v1111
        %v1113 = vshll.u32 920167782, %v1098
        %v1114 = vshrl.u32 1326507024, %v1099
        %v1115 = vor.u32 %v1113, %v1114
        %vm1116 = vcmp.lt.s32.totalorder %v1097, 1
        %vm1117 = vcmp.lt.s32.totalorder %v1097, 2
        %vm1118 = vcmp.lt.s32.totalorder %v1097, 3
        %vm1119 = vcmp.lt.s32.totalorder %v1097, 4
        %v1120 = vsel %vm1116, %v1100, %v1103
        %v1121 = vsel %vm1119, %v1109, 2102212464
        %v1122 = vsel %vm1118, %v1106, %v1121
        %v1123 = vsel %vm1117, %v1120, %v1122
        %v1124 = vsel %vm1116, %v1103, %v1106
        %v1125 = vsel %vm1119, %v1112, 920167782
        %v1126 = vsel %vm1118, %v1109, %v1125
        %v1127 = vsel %vm1117, %v1124, %v1126
        %v1128 = vsel %vm1116, %v1106, %v1109
        %v1129 = vsel %vm1119, %v1115, 1326507024
        %v1130 = vsel %vm1118, %v1112, %v1129
        %v1131 = vsel %vm1117, %v1128, %v1130
        %v1132 = vshll.u32 %v1092, 8
        %v1133 = vand.u32 %v1132, 65535
        %v1134 = vshrl.u32 %v1132, 16
        %v1135 = vand.u32 %v1131, 65535
        %v1136 = vshrl.u32 %v1131, 16
        %v1137 = vmul.u32 %v1133, %v1135
        %v1138 = vmul.u32 %v1133, %v1136
        %v1139 = vmul.u32 %v1134, %v1135
        %v1140 = vmul.u32 %v1134, %v1136
        %v1141 = vshll.u32 %v1138, 16
        %v1142 = vshrl.u32 %v1138, 16
        %v1143 = vshll.u32 %v1139, 16
        %v1144 = vshrl.u32 %v1139, 16
        %vm1145 = vc.u32 %v1137, %v1141
        %v1146 = vsel %vm1145, 1, 0
        %v1147 = vadd.s32 %v1137, %v1141
        %v1148 = vadd.s32 %v1140, %v1146
        %vm1149 = vc.u32 %v1147, %v1143
        %v1150 = vsel %vm1149, 1, 0
        %v1151 = vadd.s32 %v1147, %v1143
        %v1152 = vadd.s32 %v1148, %v1150
        %v1153 = vadd.s32 %v1152, %v1142
        %v1154 = vadd.s32 %v1153, %v1144
        %v1155 = vand.u32 %v1132, 65535
        %v1156 = vshrl.u32 %v1132, 16
        %v1157 = vand.u32 %v1127, 65535
        %v1158 = vshrl.u32 %v1127, 16
        %v1159 = vmul.u32 %v1155, %v1157
        %v1160 = vmul.u32 %v1155, %v1158
        %v1161 = vmul.u32 %v1156, %v1157
        %v1162 = vmul.u32 %v1156, %v1158
        %v1163 = vshll.u32 %v1160, 16
        %v1164 = vshrl.u32 %v1160, 16
        %v1165 = vshll.u32 %v1161, 16
        %v1166 = vshrl.u32 %v1161, 16
        %vm1167 = vc.u32 %v1159, %v1163
        %v1168 = vsel %vm1167, 1, 0
        %v1169 = vadd.s32 %v1159, %v1163
        %v1170 = vadd.s32 %v1162, %v1168
        %vm1171 = vc.u32 %v1169, %v1165
        %v1172 = vsel %vm1171, 1, 0
        %v1173 = vadd.s32 %v1169, %v1165
        %v1174 = vadd.s32 %v1170, %v1172
        %v1175 = vadd.s32 %v1174, %v1164
        %v1176 = vadd.s32 %v1175, %v1166
        %v1177 = vmul.u32 %v1132, %v1123
        %v1178 = vadd.s32 %v1154, %v1173
        %vm1179 = vc.u32 %v1154, %v1173
        %v1180 = vadd.s32 %v1176, 1
        %v1181 = vsel %vm1179, %v1180, %v1176
        %v1182 = vadd.s32 %v1177, %v1181
        %v1183 = vadd.s32 %v1182, 536870912
        %v1184 = vshrl.u32 %v1183, 30
        %v1185 = vshll.u32 %v1184, 30
        %v1186 = vsub.s32 %v1182, %v1185
        %vm1187 = vcmp.lt.s32.totalorder %v1186, 0
        %v1188 = vsub.s32 0, %v1186
        %v1189 = vsel %vm1187, %v1188, %v1186
        %v1190 = vclz %v1189
        %v1191 = vsub.s32 %v1190, 2
        %vm1192 = vcmp.gt.s32.totalorder 0, %v1191
        %v1193 = vsel %vm1192, 0, %v1191
        %v1194 = vsub.s32 32, %v1193
        %v1195 = vshll.u32 %v1186, %v1193
        %v1196 = vshrl.u32 %v1178, %v1194
        %v1197 = vor.u32 %v1195, %v1196
        %v1198 = vsub.s32 4294967266, %v1193
        %v1199 = vadd.s32 %v1198, 127
        %v1200 = vshll.u32 %v1199, 23
        %v1201 = vor.u32 4788187, %v1200
        %v1202 = vand.u32 2147483647, %v1201
        %v1204 = vcvt.s32.f32 %v1197
        %v1205 = vmul.f32 %v1204, %v1202
        %v1206 = vxor.u32 %v1205, 2147483648
        %v1207 = vsel %vm1086, %v1206, %v1205
        %v1208 = vsub.s32 4, %v1184
        %v1209 = vsel %vm1086, %v1208, %v1184
        %v1210 = vsel %vm1085, %v772, %v1207
        %v1211 = vsel %vm1085, 0, %v1209
        %v1212 = vmul.f32 %v1210, %v1210
        %v1213 = vmul.f32 %v1212, -0.001358992
        %v1214 = vadd.f32 %v1213, 0.041655596
        %v1215 = vmul.f32 %v1212, %v1214
        %v1216 = vadd.f32 %v1215, -0.4999988
        %v1217 = vmul.f32 %v1212, %v1216
        %v1218 = vadd.f32 1.0, %v1217
        %v1219 = vmul.f32 %v1210, %v1210
        %v1220 = vmul.f32 %v1219, -0.00019511016
        %v1221 = vadd.f32 %v1220, 0.008332121
        %v1222 = vmul.f32 %v1219, %v1221
        %v1223 = vadd.f32 %v1222, -0.16666654
        %v1224 = vmul.f32 %v1219, %v1223
        %v1225 = vadd.f32 %v1224, 1.0
        %v1226 = vmul.f32 %v1225, %v1210
        %vm1227 = vweird.f32 %v772
        %v1228 = vadd.s32 %v1211, 3
        %v1229 = vand.u32 %v1228, 3
        %vm1230 = vcmp.lt.s32.totalorder %v1229, 2
        %vm1231 = vcmp.eq.s32.totalorder %v1229, 0
        %v1232 = vxor.u32 %v1226, 2147483648
        %v1233 = vsel %vm1231, %v1218, %v1232
        %vm1234 = vcmp.eq.s32.totalorder %v1229, 2
        %v1235 = vxor.u32 %v1218, 2147483648
        %v1236 = vsel %vm1234, %v1235, %v1226
        %v1237 = vsel %vm1230, %v1233, %v1236
        %v1238 = vsel %vm1227, nan, %v1237
        %v1239 = vand.u32 2147483647, %v774
        %vm1240 = vcmp.le.f32.partialorder %v1239, 0.7853982
        %vm1241 = vcmp.lt.s32.totalorder %v774, 0
        %v1242 = vand.u32 %v774, 2139095040
        %v1243 = vshrl.u32 %v1242, 23
        %v1244 = vsub.s32 %v1243, 127
        %v1245 = vand.u32 2147483647, %v774
        %v1246 = vand.u32 %v1245, 8388607
        %v1247 = vor.u32 %v1246, 8388608
        %v1248 = vsub.s32 0, %v1247
        %v1249 = vadd.s32 %v1244, 1
        %vm1250 = vcmp.gt.s32.totalorder %v1249, 0
        %v1251 = vsel %vm1250, %v1249, 0
        %v1252 = vshrl.u32 %v1251, 5
        %v1253 = vand.u32 %v1251, 31
        %v1254 = vsub.s32 32, %v1253
        %v1255 = vshrl.u32 683565275, %v1254
        %v1256 = vshll.u32 683565275, %v1253
        %v1257 = vshrl.u32 2475754826, %v1254
        %v1258 = vor.u32 %v1256, %v1257
        %v1259 = vshll.u32 2475754826, %v1253
        %v1260 = vshrl.u32 2131351028, %v1254
        %v1261 = vor.u32 %v1259, %v1260
        %v1262 = vshll.u32 2131351028, %v1253
        %v1263 = vshrl.u32 2102212464, %v1254
        %v1264 = vor.u32 %v1262, %v1263
        %v1265 = vshll.u32 2102212464, %v1253
        %v1266 = vshrl.u32 920167782, %v1254
        %v1267 = vor.u32 %v1265, %v1266
        %v1268 = vshll.u32 920167782, %v1253
        %v1269 = vshrl.u32 1326507024, %v1254
        %v1270 = vor.u32 %v1268, %v1269
        %vm1271 = vcmp.lt.s32.totalorder %v1252, 1
        %vm1272 = vcmp.lt.s32.totalorder %v1252, 2
        %vm1273 = vcmp.lt.s32.totalorder %v1252, 3
        %vm1274 = vcmp.lt.s32.totalorder %v1252, 4
        %v1275 = vsel %vm1271, %v1255, %v1258
        %v1276 = vsel %vm1274, %v1264, 2102212464
        %v1277 = vsel %vm1273, %v1261, %v1276
        %v1278 = vsel %vm1272, %v1275, %v1277
        %v1279 = vsel %vm1271, %v1258, %v1261
        %v1280 = vsel %vm1274, %v1267, 920167782
        %v1281 = vsel %vm1273, %v1264, %v1280
        %v1282 = vsel %vm1272, %v1279, %v1281
        %v1283 = vsel %vm1271, %v1261, %v1264
        %v1284 = vsel %vm1274, %v1270, 1326507024
        %v1285 = vsel %vm1273, %v1267, %v1284
        %v1286 = vsel %vm1272, %v1283, %v1285
        %v1287 = vshll.u32 %v1247, 8
        %v1288 = vand.u32 %v1287, 65535
        %v1289 = vshrl.u32 %v1287, 16
        %v1290 = vand.u32 %v1286, 65535
        %v1291 = vshrl.u32 %v1286, 16
        %v1292 = vmul.u32 %v1288, %v1290
        %v1293 = vmul.u32 %v1288, %v1291
        %v1294 = vmul.u32 %v1289, %v1290
        %v1295 = vmul.u32 %v1289, %v1291
        %v1296 = vshll.u32 %v1293, 16
        %v1297 = vshrl.u32 %v1293, 16
        %v1298 = vshll.u32 %v1294, 16
        %v1299 = vshrl.u32 %v1294, 16
        %vm1300 = vc.u32 %v1292, %v1296
        %v1301 = vsel %vm1300, 1, 0
        %v1302 = vadd.s32 %v1292, %v1296
        %v1303 = vadd.s32 %v1295, %v1301
        %vm1304 = vc.u32 %v1302, %v1298
        %v1305 = vsel %vm1304, 1, 0
        %v1306 = vadd.s32 %v1302, %v1298
        %v1307 = vadd.s32 %v1303, %v1305
        %v1308 = vadd.s32 %v1307, %v1297
        %v1309 = vadd.s32 %v1308, %v1299
        %v1310 = vand.u32 %v1287, 65535
        %v1311 = vshrl.u32 %v1287, 16
        %v1312 = vand.u32 %v1282, 65535
        %v1313 = vshrl.u32 %v1282, 16
        %v1314 = vmul.u32 %v1310, %v1312
        %v1315 = vmul.u32 %v1310, %v1313
        %v1316 = vmul.u32 %v1311, %v1312
        %v1317 = vmul.u32 %v1311, %v1313
        %v1318 = vshll.u32 %v1315, 16
        %v1319 = vshrl.u32 %v1315, 16
        %v1320 = vshll.u32 %v1316, 16
        %v1321 = vshrl.u32 %v1316, 16
        %vm1322 = vc.u32 %v1314, %v1318
        %v1323 = vsel %vm1322, 1, 0
        %v1324 = vadd.s32 %v1314, %v1318
        %v1325 = vadd.s32 %v1317, %v1323
        %vm1326 = vc.u32 %v1324, %v1320
        %v1327 = vsel %vm1326, 1, 0
        %v1328 = vadd.s32 %v1324, %v1320
        %v1329 = vadd.s32 %v1325, %v1327
        %v1330 = vadd.s32 %v1329, %v1319
        %v1331 = vadd.s32 %v1330, %v1321
        %v1332 = vmul.u32 %v1287, %v1278
        %v1333 = vadd.s32 %v1309, %v1328
        %vm1334 = vc.u32 %v1309, %v1328
        %v1335 = vadd.s32 %v1331, 1
        %v1336 = vsel %vm1334, %v1335, %v1331
        %v1337 = vadd.s32 %v1332, %v1336
        %v1338 = vadd.s32 %v1337, 536870912
        %v1339 = vshrl.u32 %v1338, 30
        %v1340 = vshll.u32 %v1339, 30
        %v1341 = vsub.s32 %v1337, %v1340
        %vm1342 = vcmp.lt.s32.totalorder %v1341, 0
        %v1343 = vsub.s32 0, %v1341
        %v1344 = vsel %vm1342, %v1343, %v1341
        %v1345 = vclz %v1344
        %v1346 = vsub.s32 %v1345, 2
        %vm1347 = vcmp.gt.s32.totalorder 0, %v1346
        %v1348 = vsel %vm1347, 0, %v1346
        %v1349 = vsub.s32 32, %v1348
        %v1350 = vshll.u32 %v1341, %v1348
        %v1351 = vshrl.u32 %v1333, %v1349
        %v1352 = vor.u32 %v1350, %v1351
        %v1353 = vsub.s32 4294967266, %v1348
        %v1354 = vadd.s32 %v1353, 127
        %v1355 = vshll.u32 %v1354, 23
        %v1356 = vor.u32 4788187, %v1355
        %v1357 = vand.u32 2147483647, %v1356
        %v1359 = vcvt.s32.f32 %v1352
        %v1360 = vmul.f32 %v1359, %v1357
        %v1361 = vxor.u32 %v1360, 2147483648
        %v1362 = vsel %vm1241, %v1361, %v1360
        %v1363 = vsub.s32 4, %v1339
        %v1364 = vsel %vm1241, %v1363, %v1339
        %v1365 = vsel %vm1240, %v774, %v1362
        %v1366 = vsel %vm1240, 0, %v1364
        %v1367 = vmul.f32 %v1365, %v1365
        %v1368 = vmul.f32 %v1367, -0.001358992
        %v1369 = vadd.f32 %v1368, 0.041655596
        %v1370 = vmul.f32 %v1367, %v1369
        %v1371 = vadd.f32 %v1370, -0.4999988
        %v1372 = vmul.f32 %v1367, %v1371
        %v1373 = vadd.f32 1.0, %v1372
        %v1374 = vmul.f32 %v1365, %v1365
        %v1375 = vmul.f32 %v1374, -0.00019511016
        %v1376 = vadd.f32 %v1375, 0.008332121
        %v1377 = vmul.f32 %v1374, %v1376
        %v1378 = vadd.f32 %v1377, -0.16666654
        %v1379 = vmul.f32 %v1374, %v1378
        %v1380 = vadd.f32 %v1379, 1.0
        %v1381 = vmul.f32 %v1380, %v1365
        %vm1382 = vweird.f32 %v774
        %v1383 = vadd.s32 %v1366, 3
        %v1384 = vand.u32 %v1383, 3
        %vm1385 = vcmp.lt.s32.totalorder %v1384, 2
        %vm1386 = vcmp.eq.s32.totalorder %v1384, 0
        %v1387 = vxor.u32 %v1381, 2147483648
        %v1388 = vsel %vm1386, %v1373, %v1387
        %vm1389 = vcmp.eq.s32.totalorder %v1384, 2
        %v1390 = vxor.u32 %v1373, 2147483648
        %v1391 = vsel %vm1389, %v1390, %v1381
        %v1392 = vsel %vm1385, %v1388, %v1391
        %v1393 = vsel %vm1382, nan, %v1392
        %v1394 = vmul.f32 %v1238, %v1393
        %v1395 = vsub.f32 %v1083, %v1394
        %v1396 = vmul.f32 %v769, %v1395
        %v1397 = vstv %s101
        %v1398 = vmul.f32 %v1397, %v1396
        %v1399 = vadd.f32 %v749, %v1398
        %vm1400 = vcmask 130048
        %1401 = vst.msk [vmem:[%s74] sm:$0xff] %vm1400, %v1399
        %s1402 = sand.u32 %s47, 1
        %s1403 = scalar_lea.sflag [#allocation5], %s1402
        %s1404 = sand.u32 %s47, 1
        %s1405 = smul.addr %s1404, 8
        %s1406 = scalar_lea.vmem [#allocation4], %s1405
        // Predicated region
        $region13: #{tpu_custom_call.1} parent=11 // pred_check
          %p1407 = pneg %p53
        $region14: #{tpu_custom_call.1} parent=11 // pred_check_branch
          %1409 = sbr.rel (%p1407) target = $region16
        $region15: #{tpu_custom_call.1} parent=11 // pred_region
          %1411 = vsyncadd %s1403, 0
          %s1412 = sadd.s32 %s26, %s25
          %s1413 = smul.addr %s24, 2
          %s1414 = sadd.s32 %s1412, %s1413
          %s1415 = smul.addr %s1414, 8
          %s1416 = scalar_lea.hbm %s1, %s1415
          %s1418 = sshll.u32 %s1406, 4
          %s1419 = int_to_ptr.vmem [resolvable:$true] %s1418
          %s1420 = sshll.u32 %s1416, 4
          %s1421 = int_to_ptr.hbm [resolvable:$true] %s1420
          %1423 = dma.vmem_to_hbm [thread:$0]  %s1419, 128, %s1421, %s1403
        $region16: #{tpu_custom_call.1} parent=11 // pred_fallthru
          _
      $region12: #{tpu_custom_call.1} parent=5 // pred_fallthru
        _
      %p1424 = scmp.le.s32.totalorder 1, %s18
      // Predicated region
      $region17: #{tpu_custom_call.1} parent=5 // pred_check
        %p1425 = pneg %p1424
      $region18: #{tpu_custom_call.1} parent=5 // pred_check_branch
        %1427 = sbr.rel (%p1425) target = $region20
      $region19: #{tpu_custom_call.1} parent=5 // pred_region
        %s1428 = ssub.s32 %s18, 1
        // Predicated region
        $region21: #{tpu_custom_call.1} parent=19 // pred_check
          %p1429 = pneg %p59
        $region22: #{tpu_custom_call.1} parent=19 // pred_check_branch
          %1431 = sbr.rel (%p1429) target = $region24
        $region23: #{tpu_custom_call.1} parent=19 // pred_region
          %s1432 = sand.u32 %s50, 1
          %s1433 = scalar_lea.sflag [#allocation5], %s1432
          %s1434 = sand.u32 %s50, 1
          %s1435 = smul.addr %s1434, 8
          %s1436 = scalar_lea.vmem [#allocation4], %s1435
          %1438 = dma.done %s1433, 128
        $region24: #{tpu_custom_call.1} parent=19 // pred_fallthru
          _
      $region20: #{tpu_custom_call.1} parent=5 // pred_fallthru
        _
    $region6: #{tpu_custom_call.1} parent=1 // loop_footer
      %s22 = sadd.s32 1, %s18
    $region7: #{tpu_custom_call.1} parent=1 // loop_footer_branch
      %17 = sbr.rel target = $region3
    $region8: #{tpu_custom_call.1} parent=1 // loop_exit
      _
    %1439 = vsyncpa [#allocation5], 1
    %s1440 = scalar_lea.sflag [#allocation5], 1
    %1441 = vsyncpa %s1440, 1

</llo_original>
